<compile_context>
chip_gen: v7x
topology: tpu7x:2x2x1
jax: 0.10.0
libtpu: 0.0.40
codegen_flags: <defaults>
</compile_context>

<pallas_src>
import functools

import jax
import jax.numpy as jnp
from jax.experimental import pallas as pl
from jax.experimental.pallas import tpu as pltpu


def _round_up(x, m):
    return ((x + m - 1) // m) * m


# ----------------------------- Pallas kernel -------------------------------


def conv_gru_kernel(*refs, inputs_num):
    # refs = x_0 .. x_{inputs_num-1}, h_cur, w_split, aux, o_ref
    #   x_i, h_cur : (1, hd, T) blocks, io dtype (bf16 or f32), pixels on lanes
    #   w_split    : (inputs_num+1, 8, hd) f32   per-operand 1x1 conv weights
    #                (rows c_out..7 are zero padding)
    #   aux        : (8, 2) f32  col 0 = conv bias, col 1 = per-gate scale
    #                (= [gamma_0 .. gamma_{n-1}, 1, 1, 0...])
    #   o_ref      : (1, hd, T) h_next block
    x_refs = refs[:inputs_num]
    h_ref = refs[inputs_num]
    w_ref = refs[inputs_num + 1]
    aux_ref = refs[inputs_num + 2]
    o_ref = refs[inputs_num + 3]

    # Upcast once right after load; all accumulation / tanh stays f32.
    h = h_ref[0].astype(jnp.float32)                          # (hd, T)
    xs = [r[0].astype(jnp.float32) for r in x_refs]           # (hd, T) each

    # 1x1 conv as an accumulating sum of small MXU matmuls (no concat slab).
    pre = jnp.dot(w_ref[inputs_num], h, preferred_element_type=jnp.float32)
    for i in range(inputs_num):
        pre = pre + jnp.dot(w_ref[i], xs[i],
                            preferred_element_type=jnp.float32)
    pre = pre + aux_ref[:, 0:1]                               # + bias, (8, T)

    # sigmoid via EUP exp + approx reciprocal (no VALU divide), then fold the
    # per-gate gamma scale (gamma_i for input gates, 1 for the last two).
    g = pl.reciprocal(1.0 + jnp.exp(-pre), approx=True) * aux_ref[:, 1:2]

    forget = g[inputs_num:inputs_num + 1, :]                  # gates_list[-2]
    update = g[inputs_num + 1:inputs_num + 2, :]              # gates_list[-1]

    cc = h * (1.0 - forget)
    for i in range(inputs_num):                               # gamma already in g
        cc = cc + xs[i] * g[i:i + 1, :]
    cnm = jnp.tanh(cc)

    o_ref[0] = ((1.0 - update) * h + update * cnm).astype(o_ref.dtype)


# ------------------------------- wrapper ------------------------------------


def conv_gru_forward(input_list, h_cur, w_gates, b_gates, gammas, *,
                     tile_hw=8192, io_dtype=jnp.bfloat16):
    """ConvGRU forward.

    input_list: list of (N, hd, H, W); h_cur: (N, hd, H, W)
    w_gates: (inputs_num+2, (inputs_num+1)*hd)  (1x1 conv weight, squeezed)
    b_gates: (inputs_num+2,)
    gammas:  (inputs_num,)

    tile_hw: pixels per grid step (multiple of 128).  8192 is a good default
    on v5e/v6e; on v7x (faster HBM -> per-step overhead is a bigger fraction)
    pass 16384 — the bf16 double-buffered footprint still fits its 32 MiB
    default scoped VMEM.
    """
    n, hd, height, width = h_cur.shape
    inputs_num = len(input_list)
    for x in input_list:
        assert x.shape == h_cur.shape, "module requires input_dim == hidden_dim"
    c_in = (inputs_num + 1) * hd
    c_out = inputs_num + 2
    assert w_gates.shape == (c_out, c_in)
    assert c_out <= 8, "gate rows padded to one 8-sublane tile"
    hw = height * width

    # Channel-major, pixels on the lane axis.  Pure reshape + dtype cast at the
    # HBM boundary — no concat, no pad, no transpose.
    xs = [x.reshape(n, hd, hw).astype(io_dtype) for x in input_list]
    h = h_cur.reshape(n, hd, hw).astype(io_dtype)

    tile = min(tile_hw, _round_up(hw, 128))
    num_tiles = pl.cdiv(hw, tile)       # ragged tail -> masked writes in Pallas

    # Gate params padded to 8 rows (f32 sublane multiple) -> clean (8,T) MXU
    # result.  Weight is pre-split per operand: (inputs_num+1, 8, hd).
    w8 = jnp.zeros((8, c_in), jnp.float32).at[:c_out].set(
        w_gates.astype(jnp.float32))
    w_split = jnp.stack(
        [w8[:, i * hd:(i + 1) * hd] for i in range(inputs_num + 1)], axis=0)
    scale = jnp.concatenate(
        [gammas.astype(jnp.float32), jnp.ones((2,), jnp.float32)])
    aux = jnp.zeros((8, 2), jnp.float32)
    aux = aux.at[:c_out, 0].set(b_gates.astype(jnp.float32))
    aux = aux.at[:c_out, 1].set(scale)

    kernel = functools.partial(conv_gru_kernel, inputs_num=inputs_num)
    data_spec = pl.BlockSpec((1, hd, tile), lambda j, b: (b, 0, j))
    grid = (num_tiles, n)   # pixel-tile axis leading; both axes parallel

    out = pl.pallas_call(
        kernel,
        out_shape=jax.ShapeDtypeStruct((n, hd, hw), io_dtype),
        grid_spec=pltpu.PrefetchScalarGridSpec(
            num_scalar_prefetch=0,
            grid=grid,
            in_specs=[data_spec] * (inputs_num + 1) + [
                pl.BlockSpec((inputs_num + 1, 8, hd), lambda j, b: (0, 0, 0)),
                pl.BlockSpec((8, 2), lambda j, b: (0, 0)),
            ],
            out_specs=data_spec,
        ),
        compiler_params=pltpu.CompilerParams(
            dimension_semantics=("parallel", "parallel"),
            vmem_limit_bytes=32 * 1024 * 1024),
    )(*xs, h, w_split, aux)

    return out.reshape(n, hd, height, width)


# ------------------------- pure-JAX reference (check) ------------------------


def reference_forward(input_list, h_cur, w_gates, b_gates, gammas):
    inputs_num = len(input_list)
    combined = jnp.concatenate(list(input_list) + [h_cur], axis=1)
    conv = jnp.einsum('oc,nchw->nohw', w_gates, combined,
                      precision=jax.lax.Precision.HIGHEST)
    conv = conv + b_gates[None, :, None, None]
    g = jax.nn.sigmoid(conv)
    update = g[:, -1:]
    cc = h_cur * (1.0 - g[:, -2:-1]) + sum(
        input_list[i] * g[:, i:i + 1] * gammas[i] for i in range(inputs_num))
    cnm = jnp.tanh(cc)
    return (1.0 - update) * h_cur + update * cnm


# ----------------------------------- main ------------------------------------


if __name__ == "__main__":
    input_dim = hidden_dim = 32
    inputs_num = 2
    N, H, W = 2, 16, 16

    key = jax.random.PRNGKey(0)
    kx0, kx1, kh, kw, kb, kg = jax.random.split(key, 6)
    input_list = [
        jax.random.normal(kx0, (N, input_dim, H, W), jnp.float32),
        jax.random.normal(kx1, (N, input_dim, H, W), jnp.float32),
    ]
    h_cur = jax.random.normal(kh, (N, hidden_dim, H, W), jnp.float32)

    c_in = (inputs_num + 1) * hidden_dim
    c_out = inputs_num + 2
    w_gates = 0.1 * jax.random.normal(kw, (c_out, c_in), jnp.float32)
    b_gates = 0.1 * jax.random.normal(kb, (c_out,), jnp.float32)
    gammas = 1.0 + 0.1 * jax.random.normal(kg, (inputs_num,), jnp.float32)

    # 1) f32 I/O path: tight check against the f32 reference.
    h32 = jax.block_until_ready(conv_gru_forward(
        input_list, h_cur, w_gates, b_gates, gammas, io_dtype=jnp.float32))
    ref32 = reference_forward(input_list, h_cur, w_gates, b_gates, gammas)
    assert h32.shape == ref32.shape == (N, hidden_dim, H, W)
    err32 = float(jnp.max(jnp.abs(h32 - ref32)))
    assert err32 < 1e-2, err32

    # 2) default bf16-I/O path (the fast, HBM-bound configuration): compare
    #    against the f32 reference evaluated on the same bf16-rounded inputs.
    hbf = jax.block_until_ready(conv_gru_forward(
        input_list, h_cur, w_gates, b_gates, gammas))
    assert hbf.dtype == jnp.bfloat16 and hbf.shape == (N, hidden_dim, H, W)
    rnd = lambda a: a.astype(jnp.bfloat16).astype(jnp.float32)
    refbf = reference_forward([rnd(x) for x in input_list], rnd(h_cur),
                              w_gates, b_gates, gammas)
    errbf = float(jnp.max(jnp.abs(hbf.astype(jnp.float32) - refbf)))
    assert errbf < 5e-2, errbf

    print("KERNEL_OK")
</pallas_src>

<mosaic_0001>
module attributes {stable_mosaic.version = 11 : i64} {
  func.func @conv_gru_kernel(%arg0: i32, %arg1: i32, %arg2: memref<1x32x256xf32, #tpu.memory_space<vmem>>, %arg3: memref<1x32x256xf32, #tpu.memory_space<vmem>>, %arg4: memref<1x32x256xf32, #tpu.memory_space<vmem>>, %arg5: memref<3x8x32xf32, #tpu.memory_space<vmem>>, %arg6: memref<8x2xf32, #tpu.memory_space<vmem>>, %arg7: memref<1x32x256xf32, #tpu.memory_space<vmem>>) attributes {dimension_semantics = [#tpu.dimension_semantics<parallel>, #tpu.dimension_semantics<parallel>], iteration_bounds = array<i64: 1, 2>, scalar_prefetch = 0 : i64, scratch_operands = 0 : i64, tpu.core_type = #tpu.core_type<tc>, window_params = [{transform_indices = @transform_0, window_bounds = array<i64: 1, 32, 256>}, {transform_indices = @transform_1, window_bounds = array<i64: 1, 32, 256>}, {transform_indices = @transform_2, window_bounds = array<i64: 1, 32, 256>}, {pipeline_mode = #tpu.pipeline_mode<synchronous>, transform_indices = @transform_3, window_bounds = array<i64: 3, 8, 32>}, {pipeline_mode = #tpu.pipeline_mode<synchronous>, transform_indices = @transform_4, window_bounds = array<i64: 8, 2>}, {transform_indices = @transform_5, window_bounds = array<i64: 1, 32, 256>}]} {
    %c0 = arith.constant 0 : index
    %c0_0 = arith.constant 0 : index
    %c0_1 = arith.constant 0 : index
    %0 = vector.load %arg4[%c0, %c0_0, %c0_1] : memref<1x32x256xf32, #tpu.memory_space<vmem>>, vector<1x32x256xf32>
    %1 = vector.shape_cast %0 : vector<1x32x256xf32> to vector<32x256xf32>
    %c0_2 = arith.constant 0 : index
    %c0_3 = arith.constant 0 : index
    %c0_4 = arith.constant 0 : index
    %2 = vector.load %arg2[%c0_2, %c0_3, %c0_4] : memref<1x32x256xf32, #tpu.memory_space<vmem>>, vector<1x32x256xf32>
    %3 = vector.shape_cast %2 : vector<1x32x256xf32> to vector<32x256xf32>
    %c0_5 = arith.constant 0 : index
    %c0_6 = arith.constant 0 : index
    %c0_7 = arith.constant 0 : index
    %4 = vector.load %arg3[%c0_5, %c0_6, %c0_7] : memref<1x32x256xf32, #tpu.memory_space<vmem>>, vector<1x32x256xf32>
    %5 = vector.shape_cast %4 : vector<1x32x256xf32> to vector<32x256xf32>
    %c2 = arith.constant 2 : index
    %c0_8 = arith.constant 0 : index
    %c0_9 = arith.constant 0 : index
    %6 = vector.load %arg5[%c2, %c0_8, %c0_9] : memref<3x8x32xf32, #tpu.memory_space<vmem>>, vector<1x8x32xf32>
    %7 = vector.shape_cast %6 : vector<1x8x32xf32> to vector<8x32xf32>
    %cst = arith.constant dense<0.000000e+00> : vector<8x256xf32>
    %8 = tpu.matmul %7, %1, %cst {dimension_numbers = #tpu.dot_dimension_numbers<[1], [0], [0], [1], [0, 0, 1, 1], [], []>} : vector<8x32xf32>, vector<32x256xf32>, vector<8x256xf32> -> vector<8x256xf32>
    %c0_10 = arith.constant 0 : index
    %c0_11 = arith.constant 0 : index
    %c0_12 = arith.constant 0 : index
    %9 = vector.load %arg5[%c0_10, %c0_11, %c0_12] : memref<3x8x32xf32, #tpu.memory_space<vmem>>, vector<1x8x32xf32>
    %10 = vector.shape_cast %9 : vector<1x8x32xf32> to vector<8x32xf32>
    %cst_13 = arith.constant dense<0.000000e+00> : vector<8x256xf32>
    %11 = tpu.matmul %10, %3, %cst_13 {dimension_numbers = #tpu.dot_dimension_numbers<[1], [0], [0], [1], [0, 0, 1, 1], [], []>} : vector<8x32xf32>, vector<32x256xf32>, vector<8x256xf32> -> vector<8x256xf32>
    %12 = arith.addf %8, %11 : vector<8x256xf32>
    %c1 = arith.constant 1 : index
    %c0_14 = arith.constant 0 : index
    %c0_15 = arith.constant 0 : index
    %13 = vector.load %arg5[%c1, %c0_14, %c0_15] : memref<3x8x32xf32, #tpu.memory_space<vmem>>, vector<1x8x32xf32>
    %14 = vector.shape_cast %13 : vector<1x8x32xf32> to vector<8x32xf32>
    %cst_16 = arith.constant dense<0.000000e+00> : vector<8x256xf32>
    %15 = tpu.matmul %14, %5, %cst_16 {dimension_numbers = #tpu.dot_dimension_numbers<[1], [0], [0], [1], [0, 0, 1, 1], [], []>} : vector<8x32xf32>, vector<32x256xf32>, vector<8x256xf32> -> vector<8x256xf32>
    %16 = arith.addf %12, %15 : vector<8x256xf32>
    %c0_17 = arith.constant 0 : index
    %c0_18 = arith.constant 0 : index
    %17 = vector.load %arg6[%c0_17, %c0_18] : memref<8x2xf32, #tpu.memory_space<vmem>>, vector<8x1xf32>
    %18 = vector.broadcast %17 : vector<8x1xf32> to vector<8x256xf32>
    %19 = arith.addf %16, %18 : vector<8x256xf32>
    %cst_19 = arith.constant 0.000000e+00 : f32
    %20 = vector.broadcast %cst_19 : f32 to vector<8x256xf32>
    %21 = arith.subf %20, %19 : vector<8x256xf32>
    %22 = math.exp %21 : vector<8x256xf32>
    %cst_20 = arith.constant 1.000000e+00 : f32
    %23 = vector.broadcast %cst_20 : f32 to vector<8x256xf32>
    %24 = arith.addf %23, %22 : vector<8x256xf32>
    %25 = tpu.reciprocal %24 {approx = true} : vector<8x256xf32> -> vector<8x256xf32>
    %c0_21 = arith.constant 0 : index
    %c1_22 = arith.constant 1 : index
    %26 = vector.load %arg6[%c0_21, %c1_22] : memref<8x2xf32, #tpu.memory_space<vmem>>, vector<8x1xf32>
    %27 = vector.broadcast %26 : vector<8x1xf32> to vector<8x256xf32>
    %28 = arith.mulf %25, %27 : vector<8x256xf32>
    %29 = vector.extract_strided_slice %28 {offsets = [2, 0], sizes = [1, 256], strides = [1, 1]} : vector<8x256xf32> to vector<1x256xf32>
    %30 = vector.extract_strided_slice %28 {offsets = [3, 0], sizes = [1, 256], strides = [1, 1]} : vector<8x256xf32> to vector<1x256xf32>
    %cst_23 = arith.constant 1.000000e+00 : f32
    %31 = vector.broadcast %cst_23 : f32 to vector<1x256xf32>
    %32 = arith.subf %31, %29 : vector<1x256xf32>
    %33 = vector.broadcast %32 : vector<1x256xf32> to vector<32x256xf32>
    %34 = arith.mulf %1, %33 : vector<32x256xf32>
    %35 = vector.extract_strided_slice %28 {offsets = [0, 0], sizes = [1, 256], strides = [1, 1]} : vector<8x256xf32> to vector<1x256xf32>
    %36 = vector.broadcast %35 : vector<1x256xf32> to vector<32x256xf32>
    %37 = arith.mulf %3, %36 : vector<32x256xf32>
    %38 = arith.addf %34, %37 : vector<32x256xf32>
    %39 = vector.extract_strided_slice %28 {offsets = [1, 0], sizes = [1, 256], strides = [1, 1]} : vector<8x256xf32> to vector<1x256xf32>
    %40 = vector.broadcast %39 : vector<1x256xf32> to vector<32x256xf32>
    %41 = arith.mulf %5, %40 : vector<32x256xf32>
    %42 = arith.addf %38, %41 : vector<32x256xf32>
    %43 = math.tanh %42 : vector<32x256xf32>
    %cst_24 = arith.constant 1.000000e+00 : f32
    %44 = vector.broadcast %cst_24 : f32 to vector<1x256xf32>
    %45 = arith.subf %44, %30 : vector<1x256xf32>
    %46 = vector.broadcast %45 : vector<1x256xf32> to vector<32x256xf32>
    %47 = arith.mulf %46, %1 : vector<32x256xf32>
    %48 = vector.broadcast %30 : vector<1x256xf32> to vector<32x256xf32>
    %49 = arith.mulf %48, %43 : vector<32x256xf32>
    %50 = arith.addf %47, %49 : vector<32x256xf32>
    %c0_25 = arith.constant 0 : index
    %c0_26 = arith.constant 0 : index
    %c0_27 = arith.constant 0 : index
    %51 = vector.load %arg7[%c0_25, %c0_26, %c0_27] : memref<1x32x256xf32, #tpu.memory_space<vmem>>, vector<1x32x256xf32>
    %52 = vector.shape_cast %51 : vector<1x32x256xf32> to vector<32x256xf32>
    %53 = vector.shape_cast %50 : vector<32x256xf32> to vector<1x32x256xf32>
    tpu.vector_store %arg7[%c0_25, %c0_26, %c0_27], %53 {strides = array<i32>} : memref<1x32x256xf32, #tpu.memory_space<vmem>>, vector<1x32x256xf32>,
    return
  }
  func.func @transform_0(%arg0: i32, %arg1: i32) -> (i32, i32, i32) {
    %c0_i32 = arith.constant 0 : i32
    %c0_i32_0 = arith.constant 0 : i32
    return %arg1, %c0_i32, %arg0 : i32, i32, i32
  }
  func.func @transform_1(%arg0: i32, %arg1: i32) -> (i32, i32, i32) {
    %c0_i32 = arith.constant 0 : i32
    %c0_i32_0 = arith.constant 0 : i32
    return %arg1, %c0_i32, %arg0 : i32, i32, i32
  }
  func.func @transform_2(%arg0: i32, %arg1: i32) -> (i32, i32, i32) {
    %c0_i32 = arith.constant 0 : i32
    %c0_i32_0 = arith.constant 0 : i32
    return %arg1, %c0_i32, %arg0 : i32, i32, i32
  }
  func.func @transform_3(%arg0: i32, %arg1: i32) -> (i32, i32, i32) {
    %c0_i32 = arith.constant 0 : i32
    %c0_i32_0 = arith.constant 0 : i32
    %c0_i32_1 = arith.constant 0 : i32
    %c0_i32_2 = arith.constant 0 : i32
    return %c0_i32, %c0_i32_0, %c0_i32_1 : i32, i32, i32
  }
  func.func @transform_4(%arg0: i32, %arg1: i32) -> (i32, i32) {
    %c0_i32 = arith.constant 0 : i32
    %c0_i32_0 = arith.constant 0 : i32
    %c0_i32_1 = arith.constant 0 : i32
    return %c0_i32, %c0_i32_0 : i32, i32
  }
  func.func @transform_5(%arg0: i32, %arg1: i32) -> (i32, i32, i32) {
    %c0_i32 = arith.constant 0 : i32
    %c0_i32_0 = arith.constant 0 : i32
    return %arg1, %c0_i32, %arg0 : i32, i32, i32
  }
}

</mosaic_0001>

<llo_original>
// kernel: tpu_custom_call.1
$region0: #{tpu_custom_call.1}
  #allocation0 [shape = 'u32[]', space=smem, size = 0x4, offset = 0x4, fixed_abs, tag = 'smem constant byte address 0x4 - core index']
  #allocation1 [shape = 'u32[144,128]{1,0:T(1,128)}', space=vmem, size = 0x12000, scoped, tag = 'internal scratch']
  %s0 = inlined_call_operand.hbm [shape: f32[2,32,256], index: 0, kind: input, shape index: {}]
  %s1 = inlined_call_operand.hbm [shape: f32[2,32,256], index: 1, kind: input, shape index: {}]
  %s2 = inlined_call_operand.hbm [shape: f32[2,32,256], index: 2, kind: input, shape index: {}]
  %s3 = inlined_call_operand.hbm [shape: f32[3,8,32], index: 3, kind: input, shape index: {}]
  %s4 = inlined_call_operand.vmem [shape: f32[8,2], index: 4, kind: input, shape index: {}]
  %s5 = inlined_call_operand.hbm [shape: f32[2,32,256], index: 5, kind: output, shape index: {}]
  %s6 = sld [smem:[#allocation0]]
  $region69: #{tpu_custom_call.1} parent=0
    _
  %s8 = ssub.s32 1, %s6
  %s9 = scalar_select 0, %s8, %s6
  $region1: #{tpu_custom_call.1} parent=0
    #allocation2 [shape = 'u8[65536]{0}', space=vmem, size = 0x10000, scoped, tag = 'input window, operand 0']
    #allocation3 [shape = 's32[2]{0}', space=sflag, size = 0x8, scoped, tag = 'scoped memory for tpu_custom_call.1']
    #allocation4 [shape = 's32[2]{0}', space=sflag, size = 0x8, scoped, tag = 'scoped memory for tpu_custom_call.1']
    #allocation5 [shape = 'u8[65536]{0}', space=vmem, size = 0x10000, scoped, tag = 'input window, operand 1']
    #allocation6 [shape = 's32[2]{0}', space=sflag, size = 0x8, scoped, tag = 'scoped memory for tpu_custom_call.1']
    #allocation7 [shape = 'u8[65536]{0}', space=vmem, size = 0x10000, scoped, tag = 'input window, operand 2']
    #allocation8 [shape = 'u8[12288]{0}', space=vmem, size = 0x3000, scoped, tag = 'input window, operand 3, single buffered']
    #allocation9 [shape = 's32[1]{0}', space=sflag, size = 0x4, scoped, tag = 'scoped memory for tpu_custom_call.1']
    #allocation10 [shape = 'u8[65536]{0}', space=vmem, size = 0x10000, scoped, tag = 'output window, operand 0']
    %10 = vsyncpa [#allocation3], 0
    %s11 = scalar_lea.sflag [#allocation3], 1
    %12 = vsyncpa %s11, 0
    %13 = vsyncpa [#allocation6], 0
    %s14 = scalar_lea.sflag [#allocation6], 1
    %15 = vsyncpa %s14, 0
    %16 = vsyncpa [#allocation9], 0
    %17 = vsyncpa [#allocation4], 0
    %s18 = scalar_lea.sflag [#allocation4], 1
    %19 = vsyncpa %s18, 0
    loop: start=0, step=1, limit=4
    $region2: #{tpu_custom_call.1} parent=1 // loop_pre_header
      _
    $region3: #{tpu_custom_call.1} parent=1 // loop_header
      %s21 = sphi 0, %s25
      %p22 = scmp.ge.s32.totalorder %s21, 4
      %s28 = sphi 0, %s40
      %s29 = sphi 0, %s36
      %s30 = sphi 0, %s28
      %s31 = sphi 0, %s29
      %s32 = sphi 0, %s30
      %s33 = sphi 0, %s31
      %s45 = sphi 0, %s47
      %s48 = sphi 0, %s45
      %s49 = sphi 0, %s48
      %s65 = sphi 0, %s49
      %s73 = sphi 0, %s75
      %s76 = sphi 0, %s73
      %s77 = sphi 0, %s76
      %s93 = sphi 0, %s77
      %s101 = sphi 0, %s103
      %s104 = sphi 0, %s101
      %s105 = sphi 0, %s104
      %s121 = sphi 0, %s105
      %s125 = sphi 0, %s125
      %s127 = sphi 0, %s125
      %s128 = sphi 0, %s127
      %s142 = sphi 0, %s128
      %s146 = sphi 0, %s146
      %s148 = sphi 0, %s146
      %s149 = sphi 0, %s148
      %s163 = sphi 0, %s149
      %s171 = sphi 0, %s173
      %s174 = sphi 0, %s171
      %s175 = sphi 0, %s174
      %s191 = sphi 0, %s175
    $region4: #{tpu_custom_call.1} parent=1 // loop_header_branch
      %24 = sbr.rel (%p22) target = $region8
    $region5: #{tpu_custom_call.1} parent=1 // loop_body
      %s26 = ssub.s32 %s21, 1
      %s27 = ssub.s32 %s21, 2
      %s34 = sadd.s32 1, %s29
      %p35 = scmp.ge.s32.totalorder %s34, 2
      %s36 = scalar_select %p35, 0, %s34
      %s37 = sadd.s32 1, %s28
      %s38 = scalar_select %p35, %s37, %s28
      %p39 = scmp.ge.s32.totalorder %s38, 1
      %s40 = scalar_select %p39, 0, %s38
      %s41 = ssub.s32 %s29, %s36
      %s42 = ssub.s32 %s28, %s40
      %s43 = sor.u32 %s41, %s42
      %p44 = scmp.eq.s32.totalorder %s43, 0
      %s46 = sadd.s32 %s45, 1
      %s47 = scalar_select %p44, %s45, %s46
      %p50 = pneg %p44
      %p51 = scmp.eq.s32.totalorder %s21, 1
      %p52 = por %p50, %p51
      %p53 = scmp.ne.s32.totalorder %s45, %s48
      %p54 = scmp.eq.s32.totalorder %s21, 0
      %p55 = por %p53, %p54
      %p56 = scmp.ne.s32.totalorder %s45, %s48
      %p57 = scmp.eq.s32.totalorder %s26, 1
      %p58 = por %p56, %p57
      %p59 = scmp.ne.s32.totalorder %s48, %s49
      %p60 = scmp.eq.s32.totalorder %s26, 0
      %p61 = por %p59, %p60
      %p62 = scmp.ne.s32.totalorder %s48, %s49
      %p63 = scmp.eq.s32.totalorder %s27, 1
      %p64 = por %p62, %p63
      %p66 = scmp.ne.s32.totalorder %s49, %s65
      %p67 = scmp.eq.s32.totalorder %s27, 0
      %p68 = por %p66, %p67
      %s69 = ssub.s32 %s29, %s36
      %s70 = ssub.s32 %s28, %s40
      %s71 = sor.u32 %s69, %s70
      %p72 = scmp.eq.s32.totalorder %s71, 0
      %s74 = sadd.s32 %s73, 1
      %s75 = scalar_select %p72, %s73, %s74
      %p78 = pneg %p72
      %p79 = scmp.eq.s32.totalorder %s21, 1
      %p80 = por %p78, %p79
      %p81 = scmp.ne.s32.totalorder %s73, %s76
      %p82 = scmp.eq.s32.totalorder %s21, 0
      %p83 = por %p81, %p82
      %p84 = scmp.ne.s32.totalorder %s73, %s76
      %p85 = scmp.eq.s32.totalorder %s26, 1
      %p86 = por %p84, %p85
      %p87 = scmp.ne.s32.totalorder %s76, %s77
      %p88 = scmp.eq.s32.totalorder %s26, 0
      %p89 = por %p87, %p88
      %p90 = scmp.ne.s32.totalorder %s76, %s77
      %p91 = scmp.eq.s32.totalorder %s27, 1
      %p92 = por %p90, %p91
      %p94 = scmp.ne.s32.totalorder %s77, %s93
      %p95 = scmp.eq.s32.totalorder %s27, 0
      %p96 = por %p94, %p95
      %s97 = ssub.s32 %s29, %s36
      %s98 = ssub.s32 %s28, %s40
      %s99 = sor.u32 %s97, %s98
      %p100 = scmp.eq.s32.totalorder %s99, 0
      %s102 = sadd.s32 %s101, 1
      %s103 = scalar_select %p100, %s101, %s102
      %p106 = pneg %p100
      %p107 = scmp.eq.s32.totalorder %s21, 1
      %p108 = por %p106, %p107
      %p109 = scmp.ne.s32.totalorder %s101, %s104
      %p110 = scmp.eq.s32.totalorder %s21, 0
      %p111 = por %p109, %p110
      %p112 = scmp.ne.s32.totalorder %s101, %s104
      %p113 = scmp.eq.s32.totalorder %s26, 1
      %p114 = por %p112, %p113
      %p115 = scmp.ne.s32.totalorder %s104, %s105
      %p116 = scmp.eq.s32.totalorder %s26, 0
      %p117 = por %p115, %p116
      %p118 = scmp.ne.s32.totalorder %s104, %s105
      %p119 = scmp.eq.s32.totalorder %s27, 1
      %p120 = por %p118, %p119
      %p122 = scmp.ne.s32.totalorder %s105, %s121
      %p123 = scmp.eq.s32.totalorder %s27, 0
      %p124 = por %p122, %p123
      %s126 = sadd.s32 %s125, 1
      %p129 = scmp.eq.s32.totalorder %s21, 1
      %p130 = scmp.ne.s32.totalorder %s125, %s127
      %p131 = scmp.eq.s32.totalorder %s21, 0
      %p132 = por %p130, %p131
      %p133 = scmp.ne.s32.totalorder %s125, %s127
      %p134 = scmp.eq.s32.totalorder %s26, 1
      %p135 = por %p133, %p134
      %p136 = scmp.ne.s32.totalorder %s127, %s128
      %p137 = scmp.eq.s32.totalorder %s26, 0
      %p138 = por %p136, %p137
      %p139 = scmp.ne.s32.totalorder %s127, %s128
      %p140 = scmp.eq.s32.totalorder %s27, 1
      %p141 = por %p139, %p140
      %p143 = scmp.ne.s32.totalorder %s128, %s142
      %p144 = scmp.eq.s32.totalorder %s27, 0
      %p145 = por %p143, %p144
      %s147 = sadd.s32 %s146, 1
      %p150 = scmp.eq.s32.totalorder %s21, 1
      %p151 = scmp.ne.s32.totalorder %s146, %s148
      %p152 = scmp.eq.s32.totalorder %s21, 0
      %p153 = por %p151, %p152
      %p154 = scmp.ne.s32.totalorder %s146, %s148
      %p155 = scmp.eq.s32.totalorder %s26, 1
      %p156 = por %p154, %p155
      %p157 = scmp.ne.s32.totalorder %s148, %s149
      %p158 = scmp.eq.s32.totalorder %s26, 0
      %p159 = por %p157, %p158
      %p160 = scmp.ne.s32.totalorder %s148, %s149
      %p161 = scmp.eq.s32.totalorder %s27, 1
      %p162 = por %p160, %p161
      %p164 = scmp.ne.s32.totalorder %s149, %s163
      %p165 = scmp.eq.s32.totalorder %s27, 0
      %p166 = por %p164, %p165
      %s167 = ssub.s32 %s29, %s36
      %s168 = ssub.s32 %s28, %s40
      %s169 = sor.u32 %s167, %s168
      %p170 = scmp.eq.s32.totalorder %s169, 0
      %s172 = sadd.s32 %s171, 1
      %s173 = scalar_select %p170, %s171, %s172
      %p176 = pneg %p170
      %p177 = scmp.eq.s32.totalorder %s21, 1
      %p178 = por %p176, %p177
      %p179 = scmp.ne.s32.totalorder %s171, %s174
      %p180 = scmp.eq.s32.totalorder %s21, 0
      %p181 = por %p179, %p180
      %p182 = scmp.ne.s32.totalorder %s171, %s174
      %p183 = scmp.eq.s32.totalorder %s26, 1
      %p184 = por %p182, %p183
      %p185 = scmp.ne.s32.totalorder %s174, %s175
      %p186 = scmp.eq.s32.totalorder %s26, 0
      %p187 = por %p185, %p186
      %p188 = scmp.ne.s32.totalorder %s174, %s175
      %p189 = scmp.eq.s32.totalorder %s27, 1
      %p190 = por %p188, %p189
      %p192 = scmp.ne.s32.totalorder %s175, %s191
      %p193 = scmp.eq.s32.totalorder %s27, 0
      %p194 = por %p192, %p193
      %p195 = scmp.le.s32.totalorder 1, %s21
      %p196 = scmp.lt.s32.totalorder %s21, 3
      %p197 = pnand %p195, %p196
      %p198 = pneg %p197
      // Predicated region
      $region9: #{tpu_custom_call.1} parent=5 // pred_check
        _
      $region10: #{tpu_custom_call.1} parent=5 // pred_check_branch
        %200 = sbr.rel (%p197) target = $region12
      $region11: #{tpu_custom_call.1} parent=5 // pred_region
        %s201 = ssub.s32 %s21, 1
        // Predicated region
        $region13: #{tpu_custom_call.1} parent=11 // pred_check
          %p202 = pneg %p138
        $region14: #{tpu_custom_call.1} parent=11 // pred_check_branch
          %204 = sbr.rel (%p202) target = $region16
        $region15: #{tpu_custom_call.1} parent=11 // pred_region
          %s206 = ssub.s32 384, 384
          %207 = vsyncadd [#allocation9], %s206
          %s208 = sshll.u32 [#allocation8], 4
          %s209 = int_to_ptr.vmem [resolvable:$true] %s208
          %214 = dma.hbm_to_vmem [thread:$0]  %s3, 384, %s209, [#allocation9], 128, 128, 8
        $region16: #{tpu_custom_call.1} parent=11 // pred_fallthru
          _
        // Predicated region
        $region17: #{tpu_custom_call.1} parent=11 // pred_check
          %p215 = pneg %p159
        $region18: #{tpu_custom_call.1} parent=11 // pred_check_branch
          %217 = sbr.rel (%p215) target = $region20
        $region19: #{tpu_custom_call.1} parent=11 // pred_region
          _
        $region20: #{tpu_custom_call.1} parent=11 // pred_fallthru
          _
      $region12: #{tpu_custom_call.1} parent=5 // pred_fallthru
        _
      %p218 = scmp.lt.s32.totalorder %s21, 2
      // Predicated region
      $region21: #{tpu_custom_call.1} parent=5 // pred_check
        %p219 = pneg %p218
      $region22: #{tpu_custom_call.1} parent=5 // pred_check_branch
        %221 = sbr.rel (%p219) target = $region24
      $region23: #{tpu_custom_call.1} parent=5 // pred_region
        // Predicated region
        $region25: #{tpu_custom_call.1} parent=23 // pred_check
          %p222 = pneg %p55
        $region26: #{tpu_custom_call.1} parent=23 // pred_check_branch
          %224 = sbr.rel (%p222) target = $region28
        $region27: #{tpu_custom_call.1} parent=23 // pred_region
          %s225 = sand.u32 %s45, 1
          %s226 = scalar_lea.sflag [#allocation3], %s225
          %s227 = sand.u32 %s45, 1
          %s228 = smul.addr %s227, 64
          %s229 = scalar_lea.vmem [#allocation2], %s228
          %s230 = smul.u32 2, %s28
          %s232 = ssub.s32 1024, 1024
          %233 = vsyncadd %s226, %s232
          %s234 = smul.addr %s29, 8
          %s235 = sadd.s32 %s230, %s234
          %s236 = smul.addr %s235, 128
          %s237 = scalar_lea.hbm %s0, %s236
          %s238 = sshll.u32 %s229, 4
          %s239 = int_to_ptr.vmem [resolvable:$true] %s238
          %244 = dma.hbm_to_vmem [thread:$0]  %s237, 1024, %s239, %s226, 256, 256, 16
        $region28: #{tpu_custom_call.1} parent=23 // pred_fallthru
          _
        // Predicated region
        $region29: #{tpu_custom_call.1} parent=23 // pred_check
          %p245 = pneg %p83
        $region30: #{tpu_custom_call.1} parent=23 // pred_check_branch
          %247 = sbr.rel (%p245) target = $region32
        $region31: #{tpu_custom_call.1} parent=23 // pred_region
          %s248 = sand.u32 %s21, 1
          %s249 = scalar_lea.sflag [#allocation6], %s248
          %s250 = sand.u32 %s73, 1
          %s251 = smul.addr %s250, 64
          %s252 = scalar_lea.vmem [#allocation5], %s251
          %s253 = smul.u32 2, %s28
          %s255 = ssub.s32 1024, 1024
          %256 = vsyncadd %s249, %s255
          %s257 = smul.addr %s29, 8
          %s258 = sadd.s32 %s253, %s257
          %s259 = smul.addr %s258, 128
          %s260 = scalar_lea.hbm %s1, %s259
          %s261 = sshll.u32 %s252, 4
          %s262 = int_to_ptr.vmem [resolvable:$true] %s261
          %267 = dma.hbm_to_vmem [thread:$0]  %s260, 1024, %s262, %s249, 256, 256, 16
        $region32: #{tpu_custom_call.1} parent=23 // pred_fallthru
          _
        // Predicated region
        $region33: #{tpu_custom_call.1} parent=23 // pred_check
          %p268 = pneg %p111
        $region34: #{tpu_custom_call.1} parent=23 // pred_check_branch
          %270 = sbr.rel (%p268) target = $region36
        $region35: #{tpu_custom_call.1} parent=23 // pred_region
          %s271 = sand.u32 %s21, 1
          %s272 = scalar_lea.sflag [#allocation6], %s271
          %s273 = sand.u32 %s101, 1
          %s274 = smul.addr %s273, 64
          %s275 = scalar_lea.vmem [#allocation7], %s274
          %s276 = smul.u32 2, %s28
          %s278 = ssub.s32 1024, 1024
          %279 = vsyncadd %s272, %s278
          %s280 = smul.addr %s29, 8
          %s281 = sadd.s32 %s276, %s280
          %s282 = smul.addr %s281, 128
          %s283 = scalar_lea.hbm %s2, %s282
          %s284 = sshll.u32 %s275, 4
          %s285 = int_to_ptr.vmem [resolvable:$true] %s284
          %290 = dma.hbm_to_vmem [thread:$0]  %s283, 1024, %s285, %s272, 256, 256, 16
        $region36: #{tpu_custom_call.1} parent=23 // pred_fallthru
          _
      $region24: #{tpu_custom_call.1} parent=5 // pred_fallthru
        _
      %p291 = scmp.le.s32.totalorder 1, %s21
      %p292 = scmp.lt.s32.totalorder %s21, 3
      %p293 = pnand %p291, %p292
      %p294 = pneg %p293
      // Predicated region
      $region37: #{tpu_custom_call.1} parent=5 // pred_check
        _
      $region38: #{tpu_custom_call.1} parent=5 // pred_check_branch
        %296 = sbr.rel (%p293) target = $region40
      $region39: #{tpu_custom_call.1} parent=5 // pred_region
        %s297 = ssub.s32 %s21, 1
        %s298 = sand.u32 %s48, 1
        %s299 = scalar_lea.sflag [#allocation3], %s298
        %s300 = sand.u32 %s48, 1
        %s301 = smul.addr %s300, 64
        %s302 = scalar_lea.vmem [#allocation2], %s301
        // Predicated region
        $region41: #{tpu_custom_call.1} parent=39 // pred_check
          %p303 = pneg %p61
        $region42: #{tpu_custom_call.1} parent=39 // pred_check_branch
          %305 = sbr.rel (%p303) target = $region44
        $region43: #{tpu_custom_call.1} parent=39 // pred_region
          %306 = dma.done %s299, 1024
        $region44: #{tpu_custom_call.1} parent=39 // pred_fallthru
          _
        %s307 = sand.u32 %s26, 1
        %s308 = scalar_lea.sflag [#allocation6], %s307
        %s309 = sand.u32 %s76, 1
        %s310 = smul.addr %s309, 64
        %s311 = scalar_lea.vmem [#allocation5], %s310
        // Predicated region
        $region45: #{tpu_custom_call.1} parent=39 // pred_check
          %p312 = pneg %p89
        $region46: #{tpu_custom_call.1} parent=39 // pred_check_branch
          %314 = sbr.rel (%p312) target = $region48
        $region47: #{tpu_custom_call.1} parent=39 // pred_region
          %315 = dma.done %s308, 1024
        $region48: #{tpu_custom_call.1} parent=39 // pred_fallthru
          _
        %s316 = sand.u32 %s26, 1
        %s317 = scalar_lea.sflag [#allocation6], %s316
        %s318 = sand.u32 %s104, 1
        %s319 = smul.addr %s318, 64
        %s320 = scalar_lea.vmem [#allocation7], %s319
        // Predicated region
        $region49: #{tpu_custom_call.1} parent=39 // pred_check
          %p321 = pneg %p117
        $region50: #{tpu_custom_call.1} parent=39 // pred_check_branch
          %323 = sbr.rel (%p321) target = $region52
        $region51: #{tpu_custom_call.1} parent=39 // pred_region
          %324 = dma.done %s317, 1024
        $region52: #{tpu_custom_call.1} parent=39 // pred_fallthru
          _
        // Predicated region
        $region53: #{tpu_custom_call.1} parent=39 // pred_check
          %p325 = pneg %p138
        $region54: #{tpu_custom_call.1} parent=39 // pred_check_branch
          %327 = sbr.rel (%p325) target = $region56
        $region55: #{tpu_custom_call.1} parent=39 // pred_region
          %328 = dma.done [#allocation9], 384
        $region56: #{tpu_custom_call.1} parent=39 // pred_fallthru
          _
        %s329 = sand.u32 %s48, 1
        %s330 = scalar_lea.sflag [#allocation3], %s329
        %s331 = sand.u32 %s48, 1
        %s332 = smul.addr %s331, 64
        %s333 = scalar_lea.vmem [#allocation2], %s332
        %p334 = pneg %p61
        %p335 = pneg %p58
        %s336 = sand.u32 %s26, 1
        %s337 = scalar_lea.sflag [#allocation6], %s336
        %s338 = sand.u32 %s76, 1
        %s339 = smul.addr %s338, 64
        %s340 = scalar_lea.vmem [#allocation5], %s339
        %p341 = pneg %p89
        %p342 = pneg %p86
        %s343 = sand.u32 %s26, 1
        %s344 = scalar_lea.sflag [#allocation6], %s343
        %s345 = sand.u32 %s104, 1
        %s346 = smul.addr %s345, 64
        %s347 = scalar_lea.vmem [#allocation7], %s346
        %p348 = pneg %p117
        %p349 = pneg %p114
        %p350 = pneg %p138
        %p351 = pneg %p135
        %p352 = pneg %p159
        %p353 = pneg %p156
        %p354 = pneg %p187
        %p355 = pneg %p184
        %s356 = sand.u32 %s174, 1
        %s357 = scalar_lea.sflag [#allocation4], %s356
        %s358 = sand.u32 %s174, 1
        %s359 = smul.addr %s358, 64
        %s360 = scalar_lea.vmem [#allocation10], %s359
        %s361 = smul.u32 2, %s30
        %s362 = smul.u32 2, %s30
        %s363 = smul.u32 2, %s30
        %s364 = smul.u32 2, %s30
        %v365 = vld [vmem:[%s320] sm:$0xff]
        %v366 = vld [vmem:[%s320 + $0x8] sm:$0xff]
        %v367 = vld [vmem:[%s320 + $0x10] sm:$0xff]
        %v368 = vld [vmem:[%s320 + $0x18] sm:$0xff]
        %v369 = vld [vmem:[%s320 + $0x20] sm:$0xff]
        %v370 = vld [vmem:[%s320 + $0x28] sm:$0xff]
        %v371 = vld [vmem:[%s320 + $0x30] sm:$0xff]
        %v372 = vld [vmem:[%s320 + $0x38] sm:$0xff]
        %v373 = vld [vmem:[%s302] sm:$0xff]
        %v374 = vld [vmem:[%s302 + $0x8] sm:$0xff]
        %v375 = vld [vmem:[%s302 + $0x10] sm:$0xff]
        %v376 = vld [vmem:[%s302 + $0x18] sm:$0xff]
        %v377 = vld [vmem:[%s302 + $0x20] sm:$0xff]
        %v378 = vld [vmem:[%s302 + $0x28] sm:$0xff]
        %v379 = vld [vmem:[%s302 + $0x30] sm:$0xff]
        %v380 = vld [vmem:[%s302 + $0x38] sm:$0xff]
        %v381 = vld [vmem:[%s311] sm:$0xff]
        %v382 = vld [vmem:[%s311 + $0x8] sm:$0xff]
        %v383 = vld [vmem:[%s311 + $0x10] sm:$0xff]
        %v384 = vld [vmem:[%s311 + $0x18] sm:$0xff]
        %v385 = vld [vmem:[%s311 + $0x20] sm:$0xff]
        %v386 = vld [vmem:[%s311 + $0x28] sm:$0xff]
        %v387 = vld [vmem:[%s311 + $0x30] sm:$0xff]
        %v388 = vld [vmem:[%s311 + $0x38] sm:$0xff]
        %s389 = scalar_lea.vmem [#allocation8], 16
        %v390 = vld [vmem:[%s389] sm:$0xff]
        %v391 = vld [vmem:[#allocation8] sm:$0xff]
        %vm392 = vcmask 261120
        %v394 = vsel %vm392, %v391, 0
        %396 = vmatprep.subr.mxu0 %v374
        %397 = vmatpush1.msra.mxu0 %v373
        %398 = vmatprep.subr.mxu0 %v376
        %399 = vmatpush1.msra.mxu0 %v375
        %400 = vmatprep.subr.mxu0 %v378
        %401 = vmatpush1.msra.mxu0 %v377
        %402 = vmatprep.subr.mxu0 %v380
        %403 = vmatpush1.msra.mxu0 %v379
        %404 = vmatprep.subr.mxu0 0.0
        %405 = vmatpush1.msra.mxu0 0.0
        %406 = vmatprep.subr.mxu0 0.0
        %407 = vmatpush1.msra.mxu0 0.0
        %408 = vmatprep.subr.mxu0 0.0
        %409 = vmatpush1.msra.mxu0 0.0
        %410 = vmatprep.subr.mxu0 0.0
        %411 = vmatpush1.msra.mxu0 0.0
        %412 = vmatprep.subr.mxu0 0.0
        %413 = vmatpush1.msra.mxu0 0.0
        %414 = vmatprep.subr.mxu0 0.0
        %415 = vmatpush1.msra.mxu0 0.0
        %416 = vmatprep.subr.mxu0 0.0
        %417 = vmatpush1.msra.mxu0 0.0
        %418 = vmatprep.subr.mxu0 0.0
        %419 = vmatpush1.msra.mxu0 0.0
        %420 = vmatprep.subr.mxu0 0.0
        %421 = vmatpush1.msra.mxu0 0.0
        %422 = vmatprep.subr.mxu0 0.0
        %423 = vmatpush1.msra.mxu0 0.0
        %424 = vmatprep.subr.mxu0 0.0
        %425 = vmatpush1.msra.mxu0 0.0
        %426 = vmatprep.subr.mxu0 0.0
        %427 = vmatpush1.msra.mxu0 0.0
        %428 = vmatprep.subr.mxu0 0.0
        %429 = vmatpush1.msra.mxu0 0.0
        %430 = vmatprep.subr.mxu0 0.0
        %431 = vmatpush1.msra.mxu0 0.0
        %432 = vmatprep.subr.mxu0 0.0
        %433 = vmatpush1.msra.mxu0 0.0
        %434 = vmatprep.subr.mxu0 0.0
        %435 = vmatpush1.msra.mxu0 0.0
        %436 = vmatprep.subr.mxu0 0.0
        %437 = vmatpush1.msra.mxu0 0.0
        %438 = vmatprep.subr.mxu0 0.0
        %439 = vmatpush1.msra.mxu0 0.0
        %440 = vmatprep.subr.mxu0 0.0
        %441 = vmatpush1.msra.mxu0 0.0
        %442 = vmatprep.subr.mxu0 0.0
        %443 = vmatpush1.msra.mxu0 0.0
        %444 = vmatprep.subr.mxu0 0.0
        %445 = vmatpush1.msra.mxu0 0.0
        %446 = vmatprep.subr.mxu0 0.0
        %447 = vmatpush1.msra.mxu0 0.0
        %448 = vmatprep.subr.mxu0 0.0
        %449 = vmatpush1.msra.mxu0 0.0
        %450 = vmatprep.subr.mxu0 0.0
        %451 = vmatpush1.msra.mxu0 0.0
        %452 = vmatprep.subr.mxu0 0.0
        %453 = vmatpush1.msra.mxu0 0.0
        %454 = vmatprep.subr.mxu0 0.0
        %455 = vmatpush1.msra.mxu0 0.0
        %456 = vmatprep.subr.mxu0 0.0
        %457 = vmatpush1.msra.mxu0 0.0
        %458 = vmatprep.subr.mxu0 0.0
        %459 = vmatpush1.msra.mxu0 0.0
        %460 = vmatprep.mubr.f32.mxu0 0.0
        %461 = vmatmul.mubr.f32.gmra.mrb[0].mxu0 %v394
        %v462 = vpop.f32.mrb[0].mxu0
        %v463 = vadd.f32 0.0, %v462
        %v464 = vpop.f32.mrb[0].mxu0
        %v465 = vadd.f32 0.0, %v464
        %466 = vdwg.mxu0
        %v468 = vsel %vm392, %v390, 0
        %470 = vmatprep.subr.mxu0 %v366
        %471 = vmatpush1.msra.mxu0 %v365
        %472 = vmatprep.subr.mxu0 %v368
        %473 = vmatpush1.msra.mxu0 %v367
        %474 = vmatprep.subr.mxu0 %v370
        %475 = vmatpush1.msra.mxu0 %v369
        %476 = vmatprep.subr.mxu0 %v372
        %477 = vmatpush1.msra.mxu0 %v371
        %478 = vmatprep.subr.mxu0 0.0
        %479 = vmatpush1.msra.mxu0 0.0
        %480 = vmatprep.subr.mxu0 0.0
        %481 = vmatpush1.msra.mxu0 0.0
        %482 = vmatprep.subr.mxu0 0.0
        %483 = vmatpush1.msra.mxu0 0.0
        %484 = vmatprep.subr.mxu0 0.0
        %485 = vmatpush1.msra.mxu0 0.0
        %486 = vmatprep.subr.mxu0 0.0
        %487 = vmatpush1.msra.mxu0 0.0
        %488 = vmatprep.subr.mxu0 0.0
        %489 = vmatpush1.msra.mxu0 0.0
        %490 = vmatprep.subr.mxu0 0.0
        %491 = vmatpush1.msra.mxu0 0.0
        %492 = vmatprep.subr.mxu0 0.0
        %493 = vmatpush1.msra.mxu0 0.0
        %494 = vmatprep.subr.mxu0 0.0
        %495 = vmatpush1.msra.mxu0 0.0
        %496 = vmatprep.subr.mxu0 0.0
        %497 = vmatpush1.msra.mxu0 0.0
        %498 = vmatprep.subr.mxu0 0.0
        %499 = vmatpush1.msra.mxu0 0.0
        %500 = vmatprep.subr.mxu0 0.0
        %501 = vmatpush1.msra.mxu0 0.0
        %502 = vmatprep.subr.mxu0 0.0
        %503 = vmatpush1.msra.mxu0 0.0
        %504 = vmatprep.subr.mxu0 0.0
        %505 = vmatpush1.msra.mxu0 0.0
        %506 = vmatprep.subr.mxu0 0.0
        %507 = vmatpush1.msra.mxu0 0.0
        %508 = vmatprep.subr.mxu0 0.0
        %509 = vmatpush1.msra.mxu0 0.0
        %510 = vmatprep.subr.mxu0 0.0
        %511 = vmatpush1.msra.mxu0 0.0
        %512 = vmatprep.subr.mxu0 0.0
        %513 = vmatpush1.msra.mxu0 0.0
        %514 = vmatprep.subr.mxu0 0.0
        %515 = vmatpush1.msra.mxu0 0.0
        %516 = vmatprep.subr.mxu0 0.0
        %517 = vmatpush1.msra.mxu0 0.0
        %518 = vmatprep.subr.mxu0 0.0
        %519 = vmatpush1.msra.mxu0 0.0
        %520 = vmatprep.subr.mxu0 0.0
        %521 = vmatpush1.msra.mxu0 0.0
        %522 = vmatprep.subr.mxu0 0.0
        %523 = vmatpush1.msra.mxu0 0.0
        %524 = vmatprep.subr.mxu0 0.0
        %525 = vmatpush1.msra.mxu0 0.0
        %526 = vmatprep.subr.mxu0 0.0
        %527 = vmatpush1.msra.mxu0 0.0
        %528 = vmatprep.subr.mxu0 0.0
        %529 = vmatpush1.msra.mxu0 0.0
        %530 = vmatprep.subr.mxu0 0.0
        %531 = vmatpush1.msra.mxu0 0.0
        %532 = vmatprep.subr.mxu0 0.0
        %533 = vmatpush1.msra.mxu0 0.0
        %534 = vmatprep.mubr.f32.mxu0 0.0
        %535 = vmatmul.mubr.f32.gmra.mrb[0].mxu0 %v468
        %v536 = vpop.f32.mrb[0].mxu0
        %v537 = vadd.f32 %v463, %v536
        %v538 = vpop.f32.mrb[0].mxu0
        %v539 = vadd.f32 %v465, %v538
        %540 = vdwg.mxu0
        %s541 = scalar_lea.vmem [#allocation8], 8
        %v542 = vld [vmem:[%s541] sm:$0xff]
        %v544 = vsel %vm392, %v542, 0
        %546 = vmatprep.subr.mxu0 %v382
        %547 = vmatpush1.msra.mxu0 %v381
        %548 = vmatprep.subr.mxu0 %v384
        %549 = vmatpush1.msra.mxu0 %v383
        %550 = vmatprep.subr.mxu0 %v386
        %551 = vmatpush1.msra.mxu0 %v385
        %552 = vmatprep.subr.mxu0 %v388
        %553 = vmatpush1.msra.mxu0 %v387
        %554 = vmatprep.subr.mxu0 0.0
        %555 = vmatpush1.msra.mxu0 0.0
        %556 = vmatprep.subr.mxu0 0.0
        %557 = vmatpush1.msra.mxu0 0.0
        %558 = vmatprep.subr.mxu0 0.0
        %559 = vmatpush1.msra.mxu0 0.0
        %560 = vmatprep.subr.mxu0 0.0
        %561 = vmatpush1.msra.mxu0 0.0
        %562 = vmatprep.subr.mxu0 0.0
        %563 = vmatpush1.msra.mxu0 0.0
        %564 = vmatprep.subr.mxu0 0.0
        %565 = vmatpush1.msra.mxu0 0.0
        %566 = vmatprep.subr.mxu0 0.0
        %567 = vmatpush1.msra.mxu0 0.0
        %568 = vmatprep.subr.mxu0 0.0
        %569 = vmatpush1.msra.mxu0 0.0
        %570 = vmatprep.subr.mxu0 0.0
        %571 = vmatpush1.msra.mxu0 0.0
        %572 = vmatprep.subr.mxu0 0.0
        %573 = vmatpush1.msra.mxu0 0.0
        %574 = vmatprep.subr.mxu0 0.0
        %575 = vmatpush1.msra.mxu0 0.0
        %576 = vmatprep.subr.mxu0 0.0
        %577 = vmatpush1.msra.mxu0 0.0
        %578 = vmatprep.subr.mxu0 0.0
        %579 = vmatpush1.msra.mxu0 0.0
        %580 = vmatprep.subr.mxu0 0.0
        %581 = vmatpush1.msra.mxu0 0.0
        %582 = vmatprep.subr.mxu0 0.0
        %583 = vmatpush1.msra.mxu0 0.0
        %584 = vmatprep.subr.mxu0 0.0
        %585 = vmatpush1.msra.mxu0 0.0
        %586 = vmatprep.subr.mxu0 0.0
        %587 = vmatpush1.msra.mxu0 0.0
        %588 = vmatprep.subr.mxu0 0.0
        %589 = vmatpush1.msra.mxu0 0.0
        %590 = vmatprep.subr.mxu0 0.0
        %591 = vmatpush1.msra.mxu0 0.0
        %592 = vmatprep.subr.mxu0 0.0
        %593 = vmatpush1.msra.mxu0 0.0
        %594 = vmatprep.subr.mxu0 0.0
        %595 = vmatpush1.msra.mxu0 0.0
        %596 = vmatprep.subr.mxu0 0.0
        %597 = vmatpush1.msra.mxu0 0.0
        %598 = vmatprep.subr.mxu0 0.0
        %599 = vmatpush1.msra.mxu0 0.0
        %600 = vmatprep.subr.mxu0 0.0
        %601 = vmatpush1.msra.mxu0 0.0
        %602 = vmatprep.subr.mxu0 0.0
        %603 = vmatpush1.msra.mxu0 0.0
        %604 = vmatprep.subr.mxu0 0.0
        %605 = vmatpush1.msra.mxu0 0.0
        %606 = vmatprep.subr.mxu0 0.0
        %607 = vmatpush1.msra.mxu0 0.0
        %608 = vmatprep.subr.mxu0 0.0
        %609 = vmatpush1.msra.mxu0 0.0
        %610 = vmatprep.mubr.f32.mxu0 0.0
        %611 = vmatmul.mubr.f32.gmra.mrb[0].mxu0 %v544
        %v612 = vpop.f32.mrb[0].mxu0
        %v613 = vadd.f32 0.0, %v612
        %v614 = vpop.f32.mrb[0].mxu0
        %v615 = vadd.f32 0.0, %v614
        %616 = vdwg.mxu0
        %v617 = vadd.f32 %v537, %v613
        %v618 = vadd.f32 %v539, %v615
        %v619 = vld [vmem:[%s4] sm:$0xff]
        %621 = vset.pattern.permute.xlu0 0
        %622 = vperm.xlu0 %621, %v619
        %v623 = vpop.permute.xlu0 %622
        %v625 = vadd.f32 %v617, %v623
        %v626 = vadd.f32 %v618, %v623
        %v627 = vsub.f32 0.0, %v625
        %v628 = vsub.f32 0.0, %v626
        %v629 = vmul.f32 %v627, 1.442695
        %v630 = vpow.pop %v629
        %v631 = vmul.f32 %v628, 1.442695
        %v632 = vpow.pop %v631
        %v633 = vadd.f32 %v630, 1.0
        %v634 = vadd.f32 %v632, 1.0
        %v635 = vrcp.pop %v633
        %v636 = vrcp.pop %v634
        %637 = vset.pattern.permute.xlu0 1
        %638 = vperm.xlu0 %637, %v619
        %v639 = vpop.permute.xlu0 %638
        %v641 = vmul.f32 %v635, %v639
        %v642 = vmul.f32 %v636, %v639
        %v643 = vsub.f32 1.0, %v641
        %v644 = vsub.f32 1.0, %v642
        %v645 = vlaneseq
        %v646 = vshrl.u32 %v645, 7
        %v647 = vsub.s32 2, %v646
        %v648 = vrot.slane %v643, %v647
        %v649 = vlaneseq
        %v650 = vshrl.u32 %v649, 7
        %v651 = vsub.s32 2, %v650
        %v652 = vrot.slane %v644, %v651
        %v653 = vmul.f32 %v365, %v648
        %v654 = vmul.f32 %v366, %v652
        %v655 = vmul.f32 %v367, %v648
        %v656 = vmul.f32 %v368, %v652
        %v657 = vmul.f32 %v369, %v648
        %v658 = vmul.f32 %v370, %v652
        %v659 = vmul.f32 %v371, %v648
        %v660 = vmul.f32 %v372, %v652
        %v661 = vlaneseq
        %v662 = vshrl.u32 %v661, 7
        %v663 = vsub.s32 0, %v662
        %v664 = vrot.slane %v641, %v663
        %v665 = vlaneseq
        %v666 = vshrl.u32 %v665, 7
        %v667 = vsub.s32 0, %v666
        %v668 = vrot.slane %v642, %v667
        %v669 = vmul.f32 %v373, %v664
        %v670 = vmul.f32 %v374, %v668
        %v671 = vmul.f32 %v375, %v664
        %v672 = vmul.f32 %v376, %v668
        %v673 = vmul.f32 %v377, %v664
        %v674 = vmul.f32 %v378, %v668
        %v675 = vmul.f32 %v379, %v664
        %v676 = vmul.f32 %v380, %v668
        %v677 = vadd.f32 %v653, %v669
        %v678 = vadd.f32 %v654, %v670
        %v679 = vadd.f32 %v655, %v671
        %v680 = vadd.f32 %v656, %v672
        %v681 = vadd.f32 %v657, %v673
        %v682 = vadd.f32 %v658, %v674
        %v683 = vadd.f32 %v659, %v675
        %v684 = vadd.f32 %v660, %v676
        %v685 = vlaneseq
        %v686 = vshrl.u32 %v685, 7
        %v687 = vsub.s32 1, %v686
        %v688 = vrot.slane %v641, %v687
        %v689 = vlaneseq
        %v690 = vshrl.u32 %v689, 7
        %v691 = vsub.s32 1, %v690
        %v692 = vrot.slane %v642, %v691
        %v693 = vmul.f32 %v381, %v688
        %v694 = vmul.f32 %v382, %v692
        %v695 = vmul.f32 %v383, %v688
        %v696 = vmul.f32 %v384, %v692
        %v697 = vmul.f32 %v385, %v688
        %v698 = vmul.f32 %v386, %v692
        %v699 = vmul.f32 %v387, %v688
        %v700 = vmul.f32 %v388, %v692
        %v701 = vadd.f32 %v677, %v693
        %v702 = vadd.f32 %v678, %v694
        %v703 = vadd.f32 %v679, %v695
        %v704 = vadd.f32 %v680, %v696
        %v705 = vadd.f32 %v681, %v697
        %v706 = vadd.f32 %v682, %v698
        %v707 = vadd.f32 %v683, %v699
        %v708 = vadd.f32 %v684, %v700
        %v709 = vtanh.pop %v701
        %v710 = vtanh.pop %v702
        %v711 = vtanh.pop %v703
        %v712 = vtanh.pop %v704
        %v713 = vtanh.pop %v705
        %v714 = vtanh.pop %v706
        %v715 = vtanh.pop %v707
        %v716 = vtanh.pop %v708
        %v717 = vlaneseq
        %v718 = vshrl.u32 %v717, 7
        %v719 = vsub.s32 3, %v718
        %v720 = vrot.slane %v643, %v719
        %v721 = vlaneseq
        %v722 = vshrl.u32 %v721, 7
        %v723 = vsub.s32 3, %v722
        %v724 = vrot.slane %v644, %v723
        %v725 = vmul.f32 %v720, %v365
        %v726 = vmul.f32 %v724, %v366
        %v727 = vmul.f32 %v720, %v367
        %v728 = vmul.f32 %v724, %v368
        %v729 = vmul.f32 %v720, %v369
        %v730 = vmul.f32 %v724, %v370
        %v731 = vmul.f32 %v720, %v371
        %v732 = vmul.f32 %v724, %v372
        %v733 = vlaneseq
        %v734 = vshrl.u32 %v733, 7
        %v735 = vsub.s32 3, %v734
        %v736 = vrot.slane %v641, %v735
        %v737 = vlaneseq
        %v738 = vshrl.u32 %v737, 7
        %v739 = vsub.s32 3, %v738
        %v740 = vrot.slane %v642, %v739
        %v741 = vmul.f32 %v736, %v709
        %v742 = vmul.f32 %v740, %v710
        %v743 = vmul.f32 %v736, %v711
        %v744 = vmul.f32 %v740, %v712
        %v745 = vmul.f32 %v736, %v713
        %v746 = vmul.f32 %v740, %v714
        %v747 = vmul.f32 %v736, %v715
        %v748 = vmul.f32 %v740, %v716
        %v749 = vadd.f32 %v725, %v741
        %v750 = vadd.f32 %v726, %v742
        %v751 = vadd.f32 %v727, %v743
        %v752 = vadd.f32 %v728, %v744
        %v753 = vadd.f32 %v729, %v745
        %v754 = vadd.f32 %v730, %v746
        %v755 = vadd.f32 %v731, %v747
        %v756 = vadd.f32 %v732, %v748
        %757 = vst [vmem:[%s360] sm:$0xff] %v749
        %758 = vst [vmem:[%s360 + $0x8] sm:$0xff] %v750
        %759 = vst [vmem:[%s360 + $0x10] sm:$0xff] %v751
        %760 = vst [vmem:[%s360 + $0x18] sm:$0xff] %v752
        %761 = vst [vmem:[%s360 + $0x20] sm:$0xff] %v753
        %762 = vst [vmem:[%s360 + $0x28] sm:$0xff] %v754
        %763 = vst [vmem:[%s360 + $0x30] sm:$0xff] %v755
        %764 = vst [vmem:[%s360 + $0x38] sm:$0xff] %v756
        %s765 = sand.u32 %s174, 1
        %s766 = scalar_lea.sflag [#allocation4], %s765
        %s767 = sand.u32 %s174, 1
        %s768 = smul.addr %s767, 64
        %s769 = scalar_lea.vmem [#allocation10], %s768
        // Predicated region
        $region57: #{tpu_custom_call.1} parent=39 // pred_check
          %p770 = pneg %p184
        $region58: #{tpu_custom_call.1} parent=39 // pred_check_branch
          %772 = sbr.rel (%p770) target = $region60
        $region59: #{tpu_custom_call.1} parent=39 // pred_region
          %s773 = smul.u32 2, %s30
          %s775 = ssub.s32 1024, 1024
          %776 = vsyncadd %s766, %s775
          %s777 = smul.addr %s31, 8
          %s778 = sadd.s32 %s773, %s777
          %s779 = smul.addr %s778, 128
          %s780 = scalar_lea.hbm %s5, %s779
          %s781 = sshll.u32 %s769, 4
          %s782 = int_to_ptr.vmem [resolvable:$true] %s781
          %787 = dma.vmem_to_hbm [thread:$0]  %s782, 1024, %s780, %s766, 256, 256, 16
        $region60: #{tpu_custom_call.1} parent=39 // pred_fallthru
          _
      $region40: #{tpu_custom_call.1} parent=5 // pred_fallthru
        _
      %p788 = scmp.le.s32.totalorder 2, %s21
      // Predicated region
      $region61: #{tpu_custom_call.1} parent=5 // pred_check
        %p789 = pneg %p788
      $region62: #{tpu_custom_call.1} parent=5 // pred_check_branch
        %791 = sbr.rel (%p789) target = $region64
      $region63: #{tpu_custom_call.1} parent=5 // pred_region
        %s792 = ssub.s32 %s21, 2
        // Predicated region
        $region65: #{tpu_custom_call.1} parent=63 // pred_check
          %p793 = pneg %p190
        $region66: #{tpu_custom_call.1} parent=63 // pred_check_branch
          %795 = sbr.rel (%p793) target = $region68
        $region67: #{tpu_custom_call.1} parent=63 // pred_region
          %s796 = sand.u32 %s175, 1
          %s797 = scalar_lea.sflag [#allocation4], %s796
          %s798 = sand.u32 %s175, 1
          %s799 = smul.addr %s798, 64
          %s800 = scalar_lea.vmem [#allocation10], %s799
          %801 = dma.done %s797, 1024
        $region68: #{tpu_custom_call.1} parent=63 // pred_fallthru
          _
      $region64: #{tpu_custom_call.1} parent=5 // pred_fallthru
        _
    $region6: #{tpu_custom_call.1} parent=1 // loop_footer
      %s25 = sadd.s32 1, %s21
    $region7: #{tpu_custom_call.1} parent=1 // loop_footer_branch
      %20 = sbr.rel target = $region3
    $region8: #{tpu_custom_call.1} parent=1 // loop_exit
      _
    %802 = vsyncpa [#allocation3], 1
    %s803 = scalar_lea.sflag [#allocation3], 1
    %804 = vsyncpa %s803, 1
    %805 = vsyncpa [#allocation6], 1
    %s806 = scalar_lea.sflag [#allocation6], 1
    %807 = vsyncpa %s806, 1
    %808 = vsyncpa [#allocation9], 1
    %809 = vsyncpa [#allocation4], 1
    %s810 = scalar_lea.sflag [#allocation4], 1
    %811 = vsyncpa %s810, 1

</llo_original>
